<compile_context>
chip_gen: v7x
topology: tpu7x:2x2x1
jax: 0.10.0
libtpu: 0.0.40
codegen_flags: <defaults>
</compile_context>

<pallas_src>
import jax
import jax.numpy as jnp
from jax.experimental import pallas as pl
from jax.experimental.pallas import tpu as pltpu

IN_DIM = 128
HID_DIM = 512
OUT_DIM = 97
OUT_PAD = 128            # lane-dense padded output width
N_TOK = 4
MAX_TM = 1024            # max batch-tile rows per grid step (fits v7x 64 MiB VMEM)
VMEM_LIMIT = 48 * 1024 * 1024


def mlp_kernel(x_ref, op_ref, y_ref, eq_ref, w1_ref, b1_ref, w2_ref, b2_ref, out_ref):
    # x/op/y/eq: (TM, 128) compute dtype   w1: (128, 512) compute dtype
    # b1: (1, 512) f32                     w2: (512, 128) compute dtype (0.25 folded in, zero-padded)
    # b2: (1, 128) f32 (zero-padded)       out: (TM, 128) f32
    tm = x_ref.shape[0]

    # One (4*TM, 128) @ (128, 512) GEMM: W1 stays staged in the MXU across all 4 tokens.
    lhs = jnp.concatenate([x_ref[...], op_ref[...], y_ref[...], eq_ref[...]], axis=0)
    h = jnp.dot(lhs, w1_ref[...], preferred_element_type=jnp.float32) + b1_ref[...]
    h = jnp.maximum(h, 0.0)

    # Token mean hoisted before the second Linear (exact by linearity); sum here,
    # the 1/4 scale lives in w2.
    h_sum = (h[0 * tm:1 * tm] + h[1 * tm:2 * tm]) + (h[2 * tm:3 * tm] + h[3 * tm:4 * tm])

    o = jnp.dot(h_sum.astype(w2_ref.dtype), w2_ref[...], preferred_element_type=jnp.float32)
    out_ref[...] = o + b2_ref[...]


def _round_up(x, m):
    return -(-x // m) * m


def _choose_tile(B, max_tm=MAX_TM):
    """Return (tile_rows, padded_batch).

    Tiles are multiples of 16 rows (covers bf16 sublane packing). For larger
    batches: aim for >=2 grid steps (so v7x megacore uses both TensorCores) and,
    when B is already 16-aligned, prefer a tile that divides it exactly so the
    wrapper never has to jnp.pad (re-write) the inputs in HBM.
    """
    b16 = _round_up(B, 16)
    if b16 <= 32:
        return b16, b16
    cap = max(16, min(max_tm, _round_up(b16 // 2, 16)))
    if B % 16 == 0:
        for tm in range(cap, 15, -16):
            if b16 % tm == 0 and 2 * tm >= cap:
                return tm, b16
    n_steps = -(-b16 // cap)
    tm = _round_up(-(-b16 // n_steps), 16)
    return tm, n_steps * tm


def prepare_params(params, compute_dtype=jnp.float32):
    """One-time prep: pad W2/b2 to lane-dense 128 cols, fold the 1/N_TOK token-mean
    scale into W2, and cast matmul operands to the compute dtype (bf16 on v6e/v7x
    if ~1e-2 tolerance is acceptable). Bias / epilogue stays f32."""
    w1, b1, w2, b2 = params
    w2p = jnp.zeros((HID_DIM, OUT_PAD), jnp.float32).at[:, :OUT_DIM].set(
        w2 * jnp.float32(1.0 / N_TOK))
    b2p = jnp.zeros((1, OUT_PAD), jnp.float32).at[:, :OUT_DIM].set(b2)
    return (w1.astype(compute_dtype), b1.astype(jnp.float32),
            w2p.astype(compute_dtype), b2p.astype(jnp.float32))


def mlp_forward(data, prepared_params):
    w1, b1, w2p, b2p = prepared_params
    cdt = w1.dtype

    x = data['x'].astype(cdt)
    op = data['op'].astype(cdt)
    y = data['y'].astype(cdt)
    eq = data['='].astype(cdt)
    B = x.shape[0]

    tm, b_pad = _choose_tile(B)
    if b_pad != B:
        pad = ((0, b_pad - B), (0, 0))
        x, op, y, eq = (jnp.pad(x, pad), jnp.pad(op, pad),
                        jnp.pad(y, pad), jnp.pad(eq, pad))

    act_spec = pl.BlockSpec((tm, IN_DIM), lambda i: (i, 0))
    out = pl.pallas_call(
        mlp_kernel,
        out_shape=jax.ShapeDtypeStruct((b_pad, OUT_PAD), jnp.float32),
        grid=(b_pad // tm,),
        in_specs=[
            act_spec, act_spec, act_spec, act_spec,                # x, op, y, '='
            pl.BlockSpec((IN_DIM, HID_DIM), lambda i: (0, 0)),     # w1 (VMEM-resident)
            pl.BlockSpec((1, HID_DIM), lambda i: (0, 0)),          # b1
            pl.BlockSpec((HID_DIM, OUT_PAD), lambda i: (0, 0)),    # w2 (padded, 0.25-scaled)
            pl.BlockSpec((1, OUT_PAD), lambda i: (0, 0)),          # b2 (padded)
        ],
        out_specs=pl.BlockSpec((tm, OUT_PAD), lambda i: (i, 0)),
        compiler_params=pltpu.CompilerParams(
            dimension_semantics=("parallel",),
            vmem_limit_bytes=VMEM_LIMIT,
        ),
    )(x, op, y, eq, w1, b1, w2p, b2p)

    return out[:B, :OUT_DIM]


def init_params(key):
    """Deterministic init mimicking nn.Linear defaults: U(-1/sqrt(fan_in), 1/sqrt(fan_in))."""
    k1, k2, k3, k4 = jax.random.split(key, 4)
    bound1 = 1.0 / jnp.sqrt(IN_DIM)
    bound2 = 1.0 / jnp.sqrt(HID_DIM)
    w1 = jax.random.uniform(k1, (IN_DIM, HID_DIM), jnp.float32, -bound1, bound1)
    b1 = jax.random.uniform(k2, (1, HID_DIM), jnp.float32, -bound1, bound1)
    w2 = jax.random.uniform(k3, (HID_DIM, OUT_DIM), jnp.float32, -bound2, bound2)
    b2 = jax.random.uniform(k4, (1, OUT_DIM), jnp.float32, -bound2, bound2)
    return w1, b1, w2, b2


if __name__ == "__main__":
    key = jax.random.PRNGKey(0)
    kp, kx, kop, ky, keq = jax.random.split(key, 5)

    B = 2
    data = {
        'x': jax.random.normal(kx, (B, IN_DIM), jnp.float32),
        'op': jax.random.normal(kop, (B, IN_DIM), jnp.float32),
        'y': jax.random.normal(ky, (B, IN_DIM), jnp.float32),
        '=': jax.random.normal(keq, (B, IN_DIM), jnp.float32),
    }
    params = init_params(kp)

    # Pure-JAX reference (matches the PyTorch module: cat -> Linear/ReLU/Linear -> mean(dim=1))
    w1, b1, w2, b2 = params
    feat = jnp.stack([data['x'], data['op'], data['y'], data['=']], axis=1)   # (B, 4, 128)
    h = jnp.maximum(feat @ w1 + b1[0], 0.0)
    ref = jnp.mean(h @ w2 + b2[0], axis=1)

    # f32 matmul-operand path (tight tolerance).
    out_f32 = jax.block_until_ready(mlp_forward(data, prepare_params(params, jnp.float32)))
    assert out_f32.shape == (B, OUT_DIM)
    assert jnp.allclose(out_f32, ref, atol=1e-4, rtol=1e-4)

    # bf16 matmul-operand path (v6e/v7x MXU fast path; f32 accumulation + epilogue).
    out_bf16 = jax.block_until_ready(mlp_forward(data, prepare_params(params, jnp.bfloat16)))
    assert out_bf16.shape == (B, OUT_DIM)
    assert jnp.allclose(out_bf16, ref, atol=3e-2, rtol=3e-2)

    print("KERNEL_OK")
</pallas_src>

<mosaic_0001>
module attributes {stable_mosaic.version = 11 : i64} {
  func.func @mlp_kernel(%arg0: i32, %arg1: memref<16x128xf32, #tpu.memory_space<vmem>>, %arg2: memref<16x128xf32, #tpu.memory_space<vmem>>, %arg3: memref<16x128xf32, #tpu.memory_space<vmem>>, %arg4: memref<16x128xf32, #tpu.memory_space<vmem>>, %arg5: memref<128x512xf32, #tpu.memory_space<vmem>>, %arg6: memref<1x512xf32, #tpu.memory_space<vmem>>, %arg7: memref<512x128xf32, #tpu.memory_space<vmem>>, %arg8: memref<1x128xf32, #tpu.memory_space<vmem>>, %arg9: memref<16x128xf32, #tpu.memory_space<vmem>>) attributes {dimension_semantics = [#tpu.dimension_semantics<parallel>], iteration_bounds = array<i64: 1>, scalar_prefetch = 0 : i64, scratch_operands = 0 : i64, tpu.core_type = #tpu.core_type<tc>, window_params = [{transform_indices = @transform_0, window_bounds = array<i64: 16, 128>}, {transform_indices = @transform_1, window_bounds = array<i64: 16, 128>}, {transform_indices = @transform_2, window_bounds = array<i64: 16, 128>}, {transform_indices = @transform_3, window_bounds = array<i64: 16, 128>}, {pipeline_mode = #tpu.pipeline_mode<synchronous>, transform_indices = @transform_4, window_bounds = array<i64: 128, 512>}, {pipeline_mode = #tpu.pipeline_mode<synchronous>, transform_indices = @transform_5, window_bounds = array<i64: 1, 512>}, {pipeline_mode = #tpu.pipeline_mode<synchronous>, transform_indices = @transform_6, window_bounds = array<i64: 512, 128>}, {pipeline_mode = #tpu.pipeline_mode<synchronous>, transform_indices = @transform_7, window_bounds = array<i64: 1, 128>}, {transform_indices = @transform_8, window_bounds = array<i64: 16, 128>}]} {
    %c0 = arith.constant 0 : index
    %c0_0 = arith.constant 0 : index
    %0 = vector.load %arg1[%c0, %c0_0] : memref<16x128xf32, #tpu.memory_space<vmem>>, vector<16x128xf32>
    %c0_1 = arith.constant 0 : index
    %c0_2 = arith.constant 0 : index
    %1 = vector.load %arg2[%c0_1, %c0_2] : memref<16x128xf32, #tpu.memory_space<vmem>>, vector<16x128xf32>
    %c0_3 = arith.constant 0 : index
    %c0_4 = arith.constant 0 : index
    %2 = vector.load %arg3[%c0_3, %c0_4] : memref<16x128xf32, #tpu.memory_space<vmem>>, vector<16x128xf32>
    %c0_5 = arith.constant 0 : index
    %c0_6 = arith.constant 0 : index
    %3 = vector.load %arg4[%c0_5, %c0_6] : memref<16x128xf32, #tpu.memory_space<vmem>>, vector<16x128xf32>
    %4 = tpu.concatenate %0, %1, %2, %3 in 0 : vector<16x128xf32>, vector<16x128xf32>, vector<16x128xf32>, vector<16x128xf32> -> vector<64x128xf32>
    %c0_7 = arith.constant 0 : index
    %c0_8 = arith.constant 0 : index
    %5 = vector.load %arg5[%c0_7, %c0_8] : memref<128x512xf32, #tpu.memory_space<vmem>>, vector<128x512xf32>
    %cst = arith.constant dense<0.000000e+00> : vector<64x512xf32>
    %6 = tpu.matmul %4, %5, %cst {dimension_numbers = #tpu.dot_dimension_numbers<[1], [0], [0], [1], [0, 0, 1, 1], [], []>} : vector<64x128xf32>, vector<128x512xf32>, vector<64x512xf32> -> vector<64x512xf32>
    %c0_9 = arith.constant 0 : index
    %c0_10 = arith.constant 0 : index
    %7 = vector.load %arg6[%c0_9, %c0_10] : memref<1x512xf32, #tpu.memory_space<vmem>>, vector<1x512xf32>
    %8 = vector.broadcast %7 : vector<1x512xf32> to vector<64x512xf32>
    %9 = arith.addf %6, %8 : vector<64x512xf32>
    %cst_11 = arith.constant 0.000000e+00 : f32
    %10 = vector.broadcast %cst_11 : f32 to vector<64x512xf32>
    %11 = arith.maximumf %9, %10 : vector<64x512xf32>
    %12 = vector.extract_strided_slice %11 {offsets = [0, 0], sizes = [16, 512], strides = [1, 1]} : vector<64x512xf32> to vector<16x512xf32>
    %13 = vector.extract_strided_slice %11 {offsets = [16, 0], sizes = [16, 512], strides = [1, 1]} : vector<64x512xf32> to vector<16x512xf32>
    %14 = arith.addf %12, %13 : vector<16x512xf32>
    %15 = vector.extract_strided_slice %11 {offsets = [32, 0], sizes = [16, 512], strides = [1, 1]} : vector<64x512xf32> to vector<16x512xf32>
    %16 = vector.extract_strided_slice %11 {offsets = [48, 0], sizes = [16, 512], strides = [1, 1]} : vector<64x512xf32> to vector<16x512xf32>
    %17 = arith.addf %15, %16 : vector<16x512xf32>
    %18 = arith.addf %14, %17 : vector<16x512xf32>
    %c0_12 = arith.constant 0 : index
    %c0_13 = arith.constant 0 : index
    %19 = vector.load %arg7[%c0_12, %c0_13] : memref<512x128xf32, #tpu.memory_space<vmem>>, vector<512x128xf32>
    %cst_14 = arith.constant dense<0.000000e+00> : vector<16x128xf32>
    %20 = tpu.matmul %18, %19, %cst_14 {dimension_numbers = #tpu.dot_dimension_numbers<[1], [0], [0], [1], [0, 0, 1, 1], [], []>} : vector<16x512xf32>, vector<512x128xf32>, vector<16x128xf32> -> vector<16x128xf32>
    %c0_15 = arith.constant 0 : index
    %c0_16 = arith.constant 0 : index
    %21 = vector.load %arg8[%c0_15, %c0_16] : memref<1x128xf32, #tpu.memory_space<vmem>>, vector<1x128xf32>
    %22 = vector.broadcast %21 : vector<1x128xf32> to vector<16x128xf32>
    %23 = arith.addf %20, %22 : vector<16x128xf32>
    %c0_17 = arith.constant 0 : index
    %c0_18 = arith.constant 0 : index
    %24 = vector.load %arg9[%c0_17, %c0_18] : memref<16x128xf32, #tpu.memory_space<vmem>>, vector<16x128xf32>
    tpu.vector_store %arg9[%c0_17, %c0_18], %23 {strides = array<i32>} : memref<16x128xf32, #tpu.memory_space<vmem>>, vector<16x128xf32>,
    return
  }
  func.func @transform_0(%arg0: i32) -> (i32, i32) {
    %c0_i32 = arith.constant 0 : i32
    %c0_i32_0 = arith.constant 0 : i32
    return %arg0, %c0_i32 : i32, i32
  }
  func.func @transform_1(%arg0: i32) -> (i32, i32) {
    %c0_i32 = arith.constant 0 : i32
    %c0_i32_0 = arith.constant 0 : i32
    return %arg0, %c0_i32 : i32, i32
  }
  func.func @transform_2(%arg0: i32) -> (i32, i32) {
    %c0_i32 = arith.constant 0 : i32
    %c0_i32_0 = arith.constant 0 : i32
    return %arg0, %c0_i32 : i32, i32
  }
  func.func @transform_3(%arg0: i32) -> (i32, i32) {
    %c0_i32 = arith.constant 0 : i32
    %c0_i32_0 = arith.constant 0 : i32
    return %arg0, %c0_i32 : i32, i32
  }
  func.func @transform_4(%arg0: i32) -> (i32, i32) {
    %c0_i32 = arith.constant 0 : i32
    %c0_i32_0 = arith.constant 0 : i32
    %c0_i32_1 = arith.constant 0 : i32
    return %c0_i32, %c0_i32_0 : i32, i32
  }
  func.func @transform_5(%arg0: i32) -> (i32, i32) {
    %c0_i32 = arith.constant 0 : i32
    %c0_i32_0 = arith.constant 0 : i32
    %c0_i32_1 = arith.constant 0 : i32
    return %c0_i32, %c0_i32_0 : i32, i32
  }
  func.func @transform_6(%arg0: i32) -> (i32, i32) {
    %c0_i32 = arith.constant 0 : i32
    %c0_i32_0 = arith.constant 0 : i32
    %c0_i32_1 = arith.constant 0 : i32
    return %c0_i32, %c0_i32_0 : i32, i32
  }
  func.func @transform_7(%arg0: i32) -> (i32, i32) {
    %c0_i32 = arith.constant 0 : i32
    %c0_i32_0 = arith.constant 0 : i32
    %c0_i32_1 = arith.constant 0 : i32
    return %c0_i32, %c0_i32_0 : i32, i32
  }
  func.func @transform_8(%arg0: i32) -> (i32, i32) {
    %c0_i32 = arith.constant 0 : i32
    %c0_i32_0 = arith.constant 0 : i32
    return %arg0, %c0_i32 : i32, i32
  }
}

</mosaic_0001>

<llo_original>
// kernel: tpu_custom_call.1
$region0: #{tpu_custom_call.1}
  #allocation0 [shape = 'u32[]', space=smem, size = 0x4, offset = 0x4, fixed_abs, tag = 'smem constant byte address 0x4 - core index']
  #allocation1 [shape = 'u32[144,128]{1,0:T(1,128)}', space=vmem, size = 0x12000, scoped, tag = 'internal scratch']
  %s0 = inlined_call_operand.hbm [shape: f32[16,128], index: 0, kind: input, shape index: {}]
  %s1 = inlined_call_operand.hbm [shape: f32[16,128], index: 1, kind: input, shape index: {}]
  %s2 = inlined_call_operand.hbm [shape: f32[16,128], index: 2, kind: input, shape index: {}]
  %s3 = inlined_call_operand.hbm [shape: f32[16,128], index: 3, kind: input, shape index: {}]
  %s4 = inlined_call_operand.hbm [shape: f32[128,512], index: 4, kind: input, shape index: {}]
  %s5 = inlined_call_operand.vmem [shape: f32[1,512], index: 5, kind: input, shape index: {}]
  %s6 = inlined_call_operand.hbm [shape: f32[512,128], index: 6, kind: input, shape index: {}]
  %s7 = inlined_call_operand.vmem [shape: f32[1,128], index: 7, kind: input, shape index: {}]
  %s8 = inlined_call_operand.hbm [shape: f32[16,128], index: 8, kind: output, shape index: {}]
  %s9 = sld [smem:[#allocation0]]
  $region66: #{tpu_custom_call.1} parent=0
    _
  %s11 = ssub.s32 1, %s9
  %s12 = scalar_select 0, %s11, %s9
  $region1: #{tpu_custom_call.1} parent=0
    #allocation2 [shape = 'u8[8192]{0}', space=vmem, size = 0x2000, scoped, tag = 'input window, operand 0, single buffered']
    #allocation3 [shape = 's32[1]{0}', space=sflag, size = 0x4, scoped, tag = 'scoped memory for tpu_custom_call.1']
    #allocation4 [shape = 's32[1]{0}', space=sflag, size = 0x4, scoped, tag = 'scoped memory for tpu_custom_call.1']
    #allocation5 [shape = 'u8[8192]{0}', space=vmem, size = 0x2000, scoped, tag = 'input window, operand 1, single buffered']
    #allocation6 [shape = 's32[1]{0}', space=sflag, size = 0x4, scoped, tag = 'scoped memory for tpu_custom_call.1']
    #allocation7 [shape = 'u8[8192]{0}', space=vmem, size = 0x2000, scoped, tag = 'input window, operand 2, single buffered']
    #allocation8 [shape = 'u8[8192]{0}', space=vmem, size = 0x2000, scoped, tag = 'input window, operand 3, single buffered']
    #allocation9 [shape = 's32[1]{0}', space=sflag, size = 0x4, scoped, tag = 'scoped memory for tpu_custom_call.1']
    #allocation10 [shape = 'u8[262144]{0}', space=vmem, size = 0x40000, scoped, tag = 'input window, operand 4, single buffered']
    #allocation11 [shape = 'u8[262144]{0}', space=vmem, size = 0x40000, scoped, tag = 'input window, operand 6, single buffered']
    #allocation12 [shape = 's32[1]{0}', space=sflag, size = 0x4, scoped, tag = 'scoped memory for tpu_custom_call.1']
    #allocation13 [shape = 'u8[8192]{0}', space=vmem, size = 0x2000, scoped, tag = 'output window, operand 0, single buffered']
    %13 = vsyncpa [#allocation3], 0
    %14 = vsyncpa [#allocation6], 0
    %15 = vsyncpa [#allocation9], 0
    %16 = vsyncpa [#allocation12], 0
    %17 = vsyncpa [#allocation4], 0
    // Predicated region
    $region2: #{tpu_custom_call.1} parent=1 // pred_check
      _
    $region3: #{tpu_custom_call.1} parent=1 // pred_check_branch
      %19 = sbr.rel (0) target = $region5
    $region4: #{tpu_custom_call.1} parent=1 // pred_region
      %s21 = ssub.s32 256, 256
      %22 = vsyncadd [#allocation3], %s21
      %s23 = sshll.u32 [#allocation2], 4
      %s24 = int_to_ptr.vmem [resolvable:$true] %s23
      %29 = dma.hbm_to_vmem [thread:$0]  %s0, 256, %s24, [#allocation3], 128, 128, 8
    $region5: #{tpu_custom_call.1} parent=1 // pred_fallthru
      _
    // Predicated region
    $region6: #{tpu_custom_call.1} parent=1 // pred_check
      _
    $region7: #{tpu_custom_call.1} parent=1 // pred_check_branch
      %31 = sbr.rel (0) target = $region9
    $region8: #{tpu_custom_call.1} parent=1 // pred_region
      %s33 = ssub.s32 256, 256
      %34 = vsyncadd [#allocation6], %s33
      %s35 = sshll.u32 [#allocation5], 4
      %s36 = int_to_ptr.vmem [resolvable:$true] %s35
      %41 = dma.hbm_to_vmem [thread:$0]  %s1, 256, %s36, [#allocation6], 128, 128, 8
    $region9: #{tpu_custom_call.1} parent=1 // pred_fallthru
      _
    // Predicated region
    $region10: #{tpu_custom_call.1} parent=1 // pred_check
      _
    $region11: #{tpu_custom_call.1} parent=1 // pred_check_branch
      %43 = sbr.rel (0) target = $region13
    $region12: #{tpu_custom_call.1} parent=1 // pred_region
      %s45 = ssub.s32 256, 256
      %46 = vsyncadd [#allocation6], %s45
      %s47 = sshll.u32 [#allocation7], 4
      %s48 = int_to_ptr.vmem [resolvable:$true] %s47
      %53 = dma.hbm_to_vmem [thread:$0]  %s2, 256, %s48, [#allocation6], 128, 128, 8
    $region13: #{tpu_custom_call.1} parent=1 // pred_fallthru
      _
    // Predicated region
    $region14: #{tpu_custom_call.1} parent=1 // pred_check
      _
    $region15: #{tpu_custom_call.1} parent=1 // pred_check_branch
      %55 = sbr.rel (0) target = $region17
    $region16: #{tpu_custom_call.1} parent=1 // pred_region
      %s57 = ssub.s32 256, 256
      %58 = vsyncadd [#allocation9], %s57
      %s59 = sshll.u32 [#allocation8], 4
      %s60 = int_to_ptr.vmem [resolvable:$true] %s59
      %65 = dma.hbm_to_vmem [thread:$0]  %s3, 256, %s60, [#allocation9], 128, 128, 8
    $region17: #{tpu_custom_call.1} parent=1 // pred_fallthru
      _
    // Predicated region
    $region18: #{tpu_custom_call.1} parent=1 // pred_check
      _
    $region19: #{tpu_custom_call.1} parent=1 // pred_check_branch
      %67 = sbr.rel (0) target = $region21
    $region20: #{tpu_custom_call.1} parent=1 // pred_region
      %s69 = ssub.s32 8192, 8192
      %70 = vsyncadd [#allocation9], %s69
      %s71 = sshll.u32 [#allocation10], 4
      %s72 = int_to_ptr.vmem [resolvable:$true] %s71
      %77 = dma.hbm_to_vmem [thread:$0]  %s4, 8192, %s72, [#allocation9], 512, 512, 32
    $region21: #{tpu_custom_call.1} parent=1 // pred_fallthru
      _
    // Predicated region
    $region22: #{tpu_custom_call.1} parent=1 // pred_check
      _
    $region23: #{tpu_custom_call.1} parent=1 // pred_check_branch
      %79 = sbr.rel (0) target = $region25
    $region24: #{tpu_custom_call.1} parent=1 // pred_region
      _
    $region25: #{tpu_custom_call.1} parent=1 // pred_fallthru
      _
    // Predicated region
    $region26: #{tpu_custom_call.1} parent=1 // pred_check
      _
    $region27: #{tpu_custom_call.1} parent=1 // pred_check_branch
      %81 = sbr.rel (0) target = $region29
    $region28: #{tpu_custom_call.1} parent=1 // pred_region
      %s83 = ssub.s32 8192, 8192
      %84 = vsyncadd [#allocation12], %s83
      %s85 = sshll.u32 [#allocation11], 4
      %s86 = int_to_ptr.vmem [resolvable:$true] %s85
      %91 = dma.hbm_to_vmem [thread:$0]  %s6, 8192, %s86, [#allocation12], 128, 128, 8
    $region29: #{tpu_custom_call.1} parent=1 // pred_fallthru
      _
    // Predicated region
    $region30: #{tpu_custom_call.1} parent=1 // pred_check
      _
    $region31: #{tpu_custom_call.1} parent=1 // pred_check_branch
      %93 = sbr.rel (0) target = $region33
    $region32: #{tpu_custom_call.1} parent=1 // pred_region
      _
    $region33: #{tpu_custom_call.1} parent=1 // pred_fallthru
      _
    // Predicated region
    $region34: #{tpu_custom_call.1} parent=1 // pred_check
      _
    $region35: #{tpu_custom_call.1} parent=1 // pred_check_branch
      %95 = sbr.rel (0) target = $region37
    $region36: #{tpu_custom_call.1} parent=1 // pred_region
      %96 = dma.done [#allocation3], 256
    $region37: #{tpu_custom_call.1} parent=1 // pred_fallthru
      _
    // Predicated region
    $region38: #{tpu_custom_call.1} parent=1 // pred_check
      _
    $region39: #{tpu_custom_call.1} parent=1 // pred_check_branch
      %98 = sbr.rel (0) target = $region41
    $region40: #{tpu_custom_call.1} parent=1 // pred_region
      %99 = dma.done [#allocation6], 256
    $region41: #{tpu_custom_call.1} parent=1 // pred_fallthru
      _
    // Predicated region
    $region42: #{tpu_custom_call.1} parent=1 // pred_check
      _
    $region43: #{tpu_custom_call.1} parent=1 // pred_check_branch
      %101 = sbr.rel (0) target = $region45
    $region44: #{tpu_custom_call.1} parent=1 // pred_region
      %102 = dma.done [#allocation6], 256
    $region45: #{tpu_custom_call.1} parent=1 // pred_fallthru
      _
    // Predicated region
    $region46: #{tpu_custom_call.1} parent=1 // pred_check
      _
    $region47: #{tpu_custom_call.1} parent=1 // pred_check_branch
      %104 = sbr.rel (0) target = $region49
    $region48: #{tpu_custom_call.1} parent=1 // pred_region
      %105 = dma.done [#allocation9], 256
    $region49: #{tpu_custom_call.1} parent=1 // pred_fallthru
      _
    // Predicated region
    $region50: #{tpu_custom_call.1} parent=1 // pred_check
      _
    $region51: #{tpu_custom_call.1} parent=1 // pred_check_branch
      %107 = sbr.rel (0) target = $region53
    $region52: #{tpu_custom_call.1} parent=1 // pred_region
      %108 = dma.done [#allocation9], 8192
    $region53: #{tpu_custom_call.1} parent=1 // pred_fallthru
      _
    // Predicated region
    $region54: #{tpu_custom_call.1} parent=1 // pred_check
      _
    $region55: #{tpu_custom_call.1} parent=1 // pred_check_branch
      %110 = sbr.rel (0) target = $region57
    $region56: #{tpu_custom_call.1} parent=1 // pred_region
      %111 = dma.done [#allocation12], 8192
    $region57: #{tpu_custom_call.1} parent=1 // pred_fallthru
      _
    %v112 = vld [vmem:[#allocation2] sm:$0xff]
    %v113 = vld [vmem:[#allocation2 + $0x8] sm:$0xff]
    %v114 = vld [vmem:[#allocation5] sm:$0xff]
    %v115 = vld [vmem:[#allocation5 + $0x8] sm:$0xff]
    %v116 = vld [vmem:[#allocation7] sm:$0xff]
    %v117 = vld [vmem:[#allocation7 + $0x8] sm:$0xff]
    %v118 = vld [vmem:[#allocation8] sm:$0xff]
    %v119 = vld [vmem:[#allocation8 + $0x8] sm:$0xff]
    %v120 = vld [vmem:[#allocation10] sm:$0xff]
    %v121 = vld [vmem:[#allocation10 + $0x8] sm:$0xff]
    %v122 = vld [vmem:[#allocation10 + $0x10] sm:$0xff]
    %v123 = vld [vmem:[#allocation10 + $0x18] sm:$0xff]
    %v124 = vld [vmem:[#allocation10 + $0x20] sm:$0xff]
    %v125 = vld [vmem:[#allocation10 + $0x28] sm:$0xff]
    %v126 = vld [vmem:[#allocation10 + $0x30] sm:$0xff]
    %v127 = vld [vmem:[#allocation10 + $0x38] sm:$0xff]
    %v128 = vld [vmem:[#allocation10 + $0x40] sm:$0xff]
    %v129 = vld [vmem:[#allocation10 + $0x48] sm:$0xff]
    %v130 = vld [vmem:[#allocation10 + $0x50] sm:$0xff]
    %v131 = vld [vmem:[#allocation10 + $0x58] sm:$0xff]
    %v132 = vld [vmem:[#allocation10 + $0x60] sm:$0xff]
    %v133 = vld [vmem:[#allocation10 + $0x68] sm:$0xff]
    %v134 = vld [vmem:[#allocation10 + $0x70] sm:$0xff]
    %v135 = vld [vmem:[#allocation10 + $0x78] sm:$0xff]
    %v136 = vld [vmem:[#allocation10 + $0x80] sm:$0xff]
    %v137 = vld [vmem:[#allocation10 + $0x88] sm:$0xff]
    %v138 = vld [vmem:[#allocation10 + $0x90] sm:$0xff]
    %v139 = vld [vmem:[#allocation10 + $0x98] sm:$0xff]
    %v140 = vld [vmem:[#allocation10 + $0xa0] sm:$0xff]
    %v141 = vld [vmem:[#allocation10 + $0xa8] sm:$0xff]
    %v142 = vld [vmem:[#allocation10 + $0xb0] sm:$0xff]
    %v143 = vld [vmem:[#allocation10 + $0xb8] sm:$0xff]
    %v144 = vld [vmem:[#allocation10 + $0xc0] sm:$0xff]
    %v145 = vld [vmem:[#allocation10 + $0xc8] sm:$0xff]
    %v146 = vld [vmem:[#allocation10 + $0xd0] sm:$0xff]
    %v147 = vld [vmem:[#allocation10 + $0xd8] sm:$0xff]
    %v148 = vld [vmem:[#allocation10 + $0xe0] sm:$0xff]
    %v149 = vld [vmem:[#allocation10 + $0xe8] sm:$0xff]
    %v150 = vld [vmem:[#allocation10 + $0xf0] sm:$0xff]
    %v151 = vld [vmem:[#allocation10 + $0xf8] sm:$0xff]
    %v152 = vld [vmem:[#allocation10 + $0x100] sm:$0xff]
    %v153 = vld [vmem:[#allocation10 + $0x108] sm:$0xff]
    %v154 = vld [vmem:[#allocation10 + $0x110] sm:$0xff]
    %v155 = vld [vmem:[#allocation10 + $0x118] sm:$0xff]
    %v156 = vld [vmem:[#allocation10 + $0x120] sm:$0xff]
    %v157 = vld [vmem:[#allocation10 + $0x128] sm:$0xff]
    %v158 = vld [vmem:[#allocation10 + $0x130] sm:$0xff]
    %v159 = vld [vmem:[#allocation10 + $0x138] sm:$0xff]
    %v160 = vld [vmem:[#allocation10 + $0x140] sm:$0xff]
    %v161 = vld [vmem:[#allocation10 + $0x148] sm:$0xff]
    %v162 = vld [vmem:[#allocation10 + $0x150] sm:$0xff]
    %v163 = vld [vmem:[#allocation10 + $0x158] sm:$0xff]
    %v164 = vld [vmem:[#allocation10 + $0x160] sm:$0xff]
    %v165 = vld [vmem:[#allocation10 + $0x168] sm:$0xff]
    %v166 = vld [vmem:[#allocation10 + $0x170] sm:$0xff]
    %v167 = vld [vmem:[#allocation10 + $0x178] sm:$0xff]
    %v168 = vld [vmem:[#allocation10 + $0x180] sm:$0xff]
    %v169 = vld [vmem:[#allocation10 + $0x188] sm:$0xff]
    %v170 = vld [vmem:[#allocation10 + $0x190] sm:$0xff]
    %v171 = vld [vmem:[#allocation10 + $0x198] sm:$0xff]
    %v172 = vld [vmem:[#allocation10 + $0x1a0] sm:$0xff]
    %v173 = vld [vmem:[#allocation10 + $0x1a8] sm:$0xff]
    %v174 = vld [vmem:[#allocation10 + $0x1b0] sm:$0xff]
    %v175 = vld [vmem:[#allocation10 + $0x1b8] sm:$0xff]
    %v176 = vld [vmem:[#allocation10 + $0x1c0] sm:$0xff]
    %v177 = vld [vmem:[#allocation10 + $0x1c8] sm:$0xff]
    %v178 = vld [vmem:[#allocation10 + $0x1d0] sm:$0xff]
    %v179 = vld [vmem:[#allocation10 + $0x1d8] sm:$0xff]
    %v180 = vld [vmem:[#allocation10 + $0x1e0] sm:$0xff]
    %v181 = vld [vmem:[#allocation10 + $0x1e8] sm:$0xff]
    %v182 = vld [vmem:[#allocation10 + $0x1f0] sm:$0xff]
    %v183 = vld [vmem:[#allocation10 + $0x1f8] sm:$0xff]
    %v184 = vld [vmem:[%s5] sm:$0xf]
    %v186 = vlaneseq
    %v187 = vshrl.u32 %v186, 7
    %v188 = vsub.s32 0, %v187
    %v189 = vrot.slane %v184, %v188
    %v190 = vlaneseq
    %v191 = vshrl.u32 %v190, 7
    %v192 = vsub.s32 1, %v191
    %v193 = vrot.slane %v184, %v192
    %v194 = vlaneseq
    %v195 = vshrl.u32 %v194, 7
    %v196 = vsub.s32 2, %v195
    %v197 = vrot.slane %v184, %v196
    %v198 = vlaneseq
    %v199 = vshrl.u32 %v198, 7
    %v200 = vsub.s32 3, %v199
    %v201 = vrot.slane %v184, %v200
    %206 = vmatprep.subr.mxu0 %v121
    %207 = vmatpush1.msra.mxu0 %v120
    %208 = vmatprep.subr.mxu0 %v125
    %209 = vmatpush1.msra.mxu0 %v124
    %210 = vmatprep.subr.mxu0 %v129
    %211 = vmatpush1.msra.mxu0 %v128
    %212 = vmatprep.subr.mxu0 %v133
    %213 = vmatpush1.msra.mxu0 %v132
    %214 = vmatprep.subr.mxu0 %v137
    %215 = vmatpush1.msra.mxu0 %v136
    %216 = vmatprep.subr.mxu0 %v141
    %217 = vmatpush1.msra.mxu0 %v140
    %218 = vmatprep.subr.mxu0 %v145
    %219 = vmatpush1.msra.mxu0 %v144
    %220 = vmatprep.subr.mxu0 %v149
    %221 = vmatpush1.msra.mxu0 %v148
    %222 = vmatprep.subr.mxu0 %v153
    %223 = vmatpush1.msra.mxu0 %v152
    %224 = vmatprep.subr.mxu0 %v157
    %225 = vmatpush1.msra.mxu0 %v156
    %226 = vmatprep.subr.mxu0 %v161
    %227 = vmatpush1.msra.mxu0 %v160
    %228 = vmatprep.subr.mxu0 %v165
    %229 = vmatpush1.msra.mxu0 %v164
    %230 = vmatprep.subr.mxu0 %v169
    %231 = vmatpush1.msra.mxu0 %v168
    %232 = vmatprep.subr.mxu0 %v173
    %233 = vmatpush1.msra.mxu0 %v172
    %234 = vmatprep.subr.mxu0 %v177
    %235 = vmatpush1.msra.mxu0 %v176
    %236 = vmatprep.subr.mxu0 %v181
    %237 = vmatpush1.msra.mxu0 %v180
    %238 = vmatprep.subr.mxu0 0.0
    %239 = vmatpush1.msra.mxu0 0.0
    %240 = vmatprep.subr.mxu0 0.0
    %241 = vmatpush1.msra.mxu0 0.0
    %242 = vmatprep.subr.mxu0 0.0
    %243 = vmatpush1.msra.mxu0 0.0
    %244 = vmatprep.subr.mxu0 0.0
    %245 = vmatpush1.msra.mxu0 0.0
    %246 = vmatprep.subr.mxu0 0.0
    %247 = vmatpush1.msra.mxu0 0.0
    %248 = vmatprep.subr.mxu0 0.0
    %249 = vmatpush1.msra.mxu0 0.0
    %250 = vmatprep.subr.mxu0 0.0
    %251 = vmatpush1.msra.mxu0 0.0
    %252 = vmatprep.subr.mxu0 0.0
    %253 = vmatpush1.msra.mxu0 0.0
    %254 = vmatprep.subr.mxu0 0.0
    %255 = vmatpush1.msra.mxu0 0.0
    %256 = vmatprep.subr.mxu0 0.0
    %257 = vmatpush1.msra.mxu0 0.0
    %258 = vmatprep.subr.mxu0 0.0
    %259 = vmatpush1.msra.mxu0 0.0
    %260 = vmatprep.subr.mxu0 0.0
    %261 = vmatpush1.msra.mxu0 0.0
    %262 = vmatprep.subr.mxu0 0.0
    %263 = vmatpush1.msra.mxu0 0.0
    %264 = vmatprep.subr.mxu0 0.0
    %265 = vmatpush1.msra.mxu0 0.0
    %266 = vmatprep.subr.mxu0 0.0
    %267 = vmatpush1.msra.mxu0 0.0
    %268 = vmatprep.subr.mxu0 0.0
    %269 = vmatpush1.msra.mxu0 0.0
    %270 = vmatprep.mubr.f32.mxu0 0.0
    %271 = vmatmul.mubr.f32.gmra.mrb[0].mxu0 %v112
    %v272 = vpop.f32.mrb[0].mxu0
    %v273 = vadd.f32 %v189, %v272
    %v274 = vpop.f32.mrb[0].mxu0
    %v275 = vadd.f32 %v193, %v274
    %276 = vmatprep.mubr.f32.mxu0 0.0
    %277 = vmatmul.mubr.f32.gmra.mrb[0].mxu0 %v113
    %v278 = vpop.f32.mrb[0].mxu0
    %v279 = vadd.f32 %v189, %v278
    %v280 = vpop.f32.mrb[0].mxu0
    %v281 = vadd.f32 %v193, %v280
    %282 = vmatprep.mubr.f32.mxu0 0.0
    %283 = vmatmul.mubr.f32.gmra.mrb[0].mxu0 %v114
    %v284 = vpop.f32.mrb[0].mxu0
    %v285 = vadd.f32 %v189, %v284
    %v286 = vpop.f32.mrb[0].mxu0
    %v287 = vadd.f32 %v193, %v286
    %288 = vmatprep.mubr.f32.mxu0 0.0
    %289 = vmatmul.mubr.f32.gmra.mrb[0].mxu0 %v115
    %v290 = vpop.f32.mrb[0].mxu0
    %v291 = vadd.f32 %v189, %v290
    %v292 = vpop.f32.mrb[0].mxu0
    %v293 = vadd.f32 %v193, %v292
    %294 = vmatprep.mubr.f32.mxu0 0.0
    %295 = vmatmul.mubr.f32.gmra.mrb[0].mxu0 %v116
    %v296 = vpop.f32.mrb[0].mxu0
    %v297 = vadd.f32 %v189, %v296
    %v298 = vpop.f32.mrb[0].mxu0
    %v299 = vadd.f32 %v193, %v298
    %300 = vmatprep.mubr.f32.mxu0 0.0
    %301 = vmatmul.mubr.f32.gmra.mrb[0].mxu0 %v117
    %v302 = vpop.f32.mrb[0].mxu0
    %v303 = vadd.f32 %v189, %v302
    %v304 = vpop.f32.mrb[0].mxu0
    %v305 = vadd.f32 %v193, %v304
    %306 = vmatprep.mubr.f32.mxu0 0.0
    %307 = vmatmul.mubr.f32.gmra.mrb[0].mxu0 %v118
    %v308 = vpop.f32.mrb[0].mxu0
    %v309 = vadd.f32 %v189, %v308
    %v310 = vpop.f32.mrb[0].mxu0
    %v311 = vadd.f32 %v193, %v310
    %312 = vmatprep.mubr.f32.mxu0 0.0
    %313 = vmatmul.mubr.f32.gmra.mrb[0].mxu0 %v119
    %v314 = vpop.f32.mrb[0].mxu0
    %v315 = vadd.f32 %v189, %v314
    %v316 = vpop.f32.mrb[0].mxu0
    %v317 = vadd.f32 %v193, %v316
    %318 = vdwg.mxu0
    %319 = vmatprep.subr.mxu0 %v123
    %320 = vmatpush1.msra.mxu0 %v122
    %321 = vmatprep.subr.mxu0 %v127
    %322 = vmatpush1.msra.mxu0 %v126
    %323 = vmatprep.subr.mxu0 %v131
    %324 = vmatpush1.msra.mxu0 %v130
    %325 = vmatprep.subr.mxu0 %v135
    %326 = vmatpush1.msra.mxu0 %v134
    %327 = vmatprep.subr.mxu0 %v139
    %328 = vmatpush1.msra.mxu0 %v138
    %329 = vmatprep.subr.mxu0 %v143
    %330 = vmatpush1.msra.mxu0 %v142
    %331 = vmatprep.subr.mxu0 %v147
    %332 = vmatpush1.msra.mxu0 %v146
    %333 = vmatprep.subr.mxu0 %v151
    %334 = vmatpush1.msra.mxu0 %v150
    %335 = vmatprep.subr.mxu0 %v155
    %336 = vmatpush1.msra.mxu0 %v154
    %337 = vmatprep.subr.mxu0 %v159
    %338 = vmatpush1.msra.mxu0 %v158
    %339 = vmatprep.subr.mxu0 %v163
    %340 = vmatpush1.msra.mxu0 %v162
    %341 = vmatprep.subr.mxu0 %v167
    %342 = vmatpush1.msra.mxu0 %v166
    %343 = vmatprep.subr.mxu0 %v171
    %344 = vmatpush1.msra.mxu0 %v170
    %345 = vmatprep.subr.mxu0 %v175
    %346 = vmatpush1.msra.mxu0 %v174
    %347 = vmatprep.subr.mxu0 %v179
    %348 = vmatpush1.msra.mxu0 %v178
    %349 = vmatprep.subr.mxu0 %v183
    %350 = vmatpush1.msra.mxu0 %v182
    %351 = vmatprep.subr.mxu0 0.0
    %352 = vmatpush1.msra.mxu0 0.0
    %353 = vmatprep.subr.mxu0 0.0
    %354 = vmatpush1.msra.mxu0 0.0
    %355 = vmatprep.subr.mxu0 0.0
    %356 = vmatpush1.msra.mxu0 0.0
    %357 = vmatprep.subr.mxu0 0.0
    %358 = vmatpush1.msra.mxu0 0.0
    %359 = vmatprep.subr.mxu0 0.0
    %360 = vmatpush1.msra.mxu0 0.0
    %361 = vmatprep.subr.mxu0 0.0
    %362 = vmatpush1.msra.mxu0 0.0
    %363 = vmatprep.subr.mxu0 0.0
    %364 = vmatpush1.msra.mxu0 0.0
    %365 = vmatprep.subr.mxu0 0.0
    %366 = vmatpush1.msra.mxu0 0.0
    %367 = vmatprep.subr.mxu0 0.0
    %368 = vmatpush1.msra.mxu0 0.0
    %369 = vmatprep.subr.mxu0 0.0
    %370 = vmatpush1.msra.mxu0 0.0
    %371 = vmatprep.subr.mxu0 0.0
    %372 = vmatpush1.msra.mxu0 0.0
    %373 = vmatprep.subr.mxu0 0.0
    %374 = vmatpush1.msra.mxu0 0.0
    %375 = vmatprep.subr.mxu0 0.0
    %376 = vmatpush1.msra.mxu0 0.0
    %377 = vmatprep.subr.mxu0 0.0
    %378 = vmatpush1.msra.mxu0 0.0
    %379 = vmatprep.subr.mxu0 0.0
    %380 = vmatpush1.msra.mxu0 0.0
    %381 = vmatprep.subr.mxu0 0.0
    %382 = vmatpush1.msra.mxu0 0.0
    %383 = vmatprep.mubr.f32.mxu0 0.0
    %384 = vmatmul.mubr.f32.gmra.mrb[0].mxu0 %v112
    %v385 = vpop.f32.mrb[0].mxu0
    %v386 = vadd.f32 %v197, %v385
    %v387 = vpop.f32.mrb[0].mxu0
    %v388 = vadd.f32 %v201, %v387
    %389 = vmatprep.mubr.f32.mxu0 0.0
    %390 = vmatmul.mubr.f32.gmra.mrb[0].mxu0 %v113
    %v391 = vpop.f32.mrb[0].mxu0
    %v392 = vadd.f32 %v197, %v391
    %v393 = vpop.f32.mrb[0].mxu0
    %v394 = vadd.f32 %v201, %v393
    %395 = vmatprep.mubr.f32.mxu0 0.0
    %396 = vmatmul.mubr.f32.gmra.mrb[0].mxu0 %v114
    %v397 = vpop.f32.mrb[0].mxu0
    %v398 = vadd.f32 %v197, %v397
    %v399 = vpop.f32.mrb[0].mxu0
    %v400 = vadd.f32 %v201, %v399
    %401 = vmatprep.mubr.f32.mxu0 0.0
    %402 = vmatmul.mubr.f32.gmra.mrb[0].mxu0 %v115
    %v403 = vpop.f32.mrb[0].mxu0
    %v404 = vadd.f32 %v197, %v403
    %v405 = vpop.f32.mrb[0].mxu0
    %v406 = vadd.f32 %v201, %v405
    %407 = vmatprep.mubr.f32.mxu0 0.0
    %408 = vmatmul.mubr.f32.gmra.mrb[0].mxu0 %v116
    %v409 = vpop.f32.mrb[0].mxu0
    %v410 = vadd.f32 %v197, %v409
    %v411 = vpop.f32.mrb[0].mxu0
    %v412 = vadd.f32 %v201, %v411
    %413 = vmatprep.mubr.f32.mxu0 0.0
    %414 = vmatmul.mubr.f32.gmra.mrb[0].mxu0 %v117
    %v415 = vpop.f32.mrb[0].mxu0
    %v416 = vadd.f32 %v197, %v415
    %v417 = vpop.f32.mrb[0].mxu0
    %v418 = vadd.f32 %v201, %v417
    %419 = vmatprep.mubr.f32.mxu0 0.0
    %420 = vmatmul.mubr.f32.gmra.mrb[0].mxu0 %v118
    %v421 = vpop.f32.mrb[0].mxu0
    %v422 = vadd.f32 %v197, %v421
    %v423 = vpop.f32.mrb[0].mxu0
    %v424 = vadd.f32 %v201, %v423
    %425 = vmatprep.mubr.f32.mxu0 0.0
    %426 = vmatmul.mubr.f32.gmra.mrb[0].mxu0 %v119
    %v427 = vpop.f32.mrb[0].mxu0
    %v428 = vadd.f32 %v197, %v427
    %v429 = vpop.f32.mrb[0].mxu0
    %v430 = vadd.f32 %v201, %v429
    %431 = vdwg.mxu0
    %v432 = vmax.f32 %v273, 0.0
    %v433 = vmax.f32 %v275, 0.0
    %v434 = vmax.f32 %v386, 0.0
    %v435 = vmax.f32 %v388, 0.0
    %v436 = vmax.f32 %v279, 0.0
    %v437 = vmax.f32 %v281, 0.0
    %v438 = vmax.f32 %v392, 0.0
    %v439 = vmax.f32 %v394, 0.0
    %v440 = vmax.f32 %v285, 0.0
    %v441 = vmax.f32 %v287, 0.0
    %v442 = vmax.f32 %v398, 0.0
    %v443 = vmax.f32 %v400, 0.0
    %v444 = vmax.f32 %v291, 0.0
    %v445 = vmax.f32 %v293, 0.0
    %v446 = vmax.f32 %v404, 0.0
    %v447 = vmax.f32 %v406, 0.0
    %v448 = vmax.f32 %v297, 0.0
    %v449 = vmax.f32 %v299, 0.0
    %v450 = vmax.f32 %v410, 0.0
    %v451 = vmax.f32 %v412, 0.0
    %v452 = vmax.f32 %v303, 0.0
    %v453 = vmax.f32 %v305, 0.0
    %v454 = vmax.f32 %v416, 0.0
    %v455 = vmax.f32 %v418, 0.0
    %v456 = vmax.f32 %v309, 0.0
    %v457 = vmax.f32 %v311, 0.0
    %v458 = vmax.f32 %v422, 0.0
    %v459 = vmax.f32 %v424, 0.0
    %v460 = vmax.f32 %v315, 0.0
    %v461 = vmax.f32 %v317, 0.0
    %v462 = vmax.f32 %v428, 0.0
    %v463 = vmax.f32 %v430, 0.0
    %v464 = vadd.f32 %v432, %v440
    %v465 = vadd.f32 %v433, %v441
    %v466 = vadd.f32 %v434, %v442
    %v467 = vadd.f32 %v435, %v443
    %v468 = vadd.f32 %v436, %v444
    %v469 = vadd.f32 %v437, %v445
    %v470 = vadd.f32 %v438, %v446
    %v471 = vadd.f32 %v439, %v447
    %v472 = vadd.f32 %v448, %v456
    %v473 = vadd.f32 %v449, %v457
    %v474 = vadd.f32 %v450, %v458
    %v475 = vadd.f32 %v451, %v459
    %v476 = vadd.f32 %v452, %v460
    %v477 = vadd.f32 %v453, %v461
    %v478 = vadd.f32 %v454, %v462
    %v479 = vadd.f32 %v455, %v463
    %v480 = vadd.f32 %v464, %v472
    %v481 = vadd.f32 %v465, %v473
    %v482 = vadd.f32 %v466, %v474
    %v483 = vadd.f32 %v467, %v475
    %v484 = vadd.f32 %v468, %v476
    %v485 = vadd.f32 %v469, %v477
    %v486 = vadd.f32 %v470, %v478
    %v487 = vadd.f32 %v471, %v479
    %v488 = vld [vmem:[#allocation11] sm:$0xff]
    %v489 = vld [vmem:[#allocation11 + $0x8] sm:$0xff]
    %v490 = vld [vmem:[#allocation11 + $0x10] sm:$0xff]
    %v491 = vld [vmem:[#allocation11 + $0x18] sm:$0xff]
    %v492 = vld [vmem:[#allocation11 + $0x20] sm:$0xff]
    %v493 = vld [vmem:[#allocation11 + $0x28] sm:$0xff]
    %v494 = vld [vmem:[#allocation11 + $0x30] sm:$0xff]
    %v495 = vld [vmem:[#allocation11 + $0x38] sm:$0xff]
    %v496 = vld [vmem:[#allocation11 + $0x40] sm:$0xff]
    %v497 = vld [vmem:[#allocation11 + $0x48] sm:$0xff]
    %v498 = vld [vmem:[#allocation11 + $0x50] sm:$0xff]
    %v499 = vld [vmem:[#allocation11 + $0x58] sm:$0xff]
    %v500 = vld [vmem:[#allocation11 + $0x60] sm:$0xff]
    %v501 = vld [vmem:[#allocation11 + $0x68] sm:$0xff]
    %v502 = vld [vmem:[#allocation11 + $0x70] sm:$0xff]
    %v503 = vld [vmem:[#allocation11 + $0x78] sm:$0xff]
    %v504 = vld [vmem:[#allocation11 + $0x80] sm:$0xff]
    %v505 = vld [vmem:[#allocation11 + $0x88] sm:$0xff]
    %v506 = vld [vmem:[#allocation11 + $0x90] sm:$0xff]
    %v507 = vld [vmem:[#allocation11 + $0x98] sm:$0xff]
    %v508 = vld [vmem:[#allocation11 + $0xa0] sm:$0xff]
    %v509 = vld [vmem:[#allocation11 + $0xa8] sm:$0xff]
    %v510 = vld [vmem:[#allocation11 + $0xb0] sm:$0xff]
    %v511 = vld [vmem:[#allocation11 + $0xb8] sm:$0xff]
    %v512 = vld [vmem:[#allocation11 + $0xc0] sm:$0xff]
    %v513 = vld [vmem:[#allocation11 + $0xc8] sm:$0xff]
    %v514 = vld [vmem:[#allocation11 + $0xd0] sm:$0xff]
    %v515 = vld [vmem:[#allocation11 + $0xd8] sm:$0xff]
    %v516 = vld [vmem:[#allocation11 + $0xe0] sm:$0xff]
    %v517 = vld [vmem:[#allocation11 + $0xe8] sm:$0xff]
    %v518 = vld [vmem:[#allocation11 + $0xf0] sm:$0xff]
    %v519 = vld [vmem:[#allocation11 + $0xf8] sm:$0xff]
    %v520 = vld [vmem:[#allocation11 + $0x100] sm:$0xff]
    %v521 = vld [vmem:[#allocation11 + $0x108] sm:$0xff]
    %v522 = vld [vmem:[#allocation11 + $0x110] sm:$0xff]
    %v523 = vld [vmem:[#allocation11 + $0x118] sm:$0xff]
    %v524 = vld [vmem:[#allocation11 + $0x120] sm:$0xff]
    %v525 = vld [vmem:[#allocation11 + $0x128] sm:$0xff]
    %v526 = vld [vmem:[#allocation11 + $0x130] sm:$0xff]
    %v527 = vld [vmem:[#allocation11 + $0x138] sm:$0xff]
    %v528 = vld [vmem:[#allocation11 + $0x140] sm:$0xff]
    %v529 = vld [vmem:[#allocation11 + $0x148] sm:$0xff]
    %v530 = vld [vmem:[#allocation11 + $0x150] sm:$0xff]
    %v531 = vld [vmem:[#allocation11 + $0x158] sm:$0xff]
    %v532 = vld [vmem:[#allocation11 + $0x160] sm:$0xff]
    %v533 = vld [vmem:[#allocation11 + $0x168] sm:$0xff]
    %v534 = vld [vmem:[#allocation11 + $0x170] sm:$0xff]
    %v535 = vld [vmem:[#allocation11 + $0x178] sm:$0xff]
    %v536 = vld [vmem:[#allocation11 + $0x180] sm:$0xff]
    %v537 = vld [vmem:[#allocation11 + $0x188] sm:$0xff]
    %v538 = vld [vmem:[#allocation11 + $0x190] sm:$0xff]
    %v539 = vld [vmem:[#allocation11 + $0x198] sm:$0xff]
    %v540 = vld [vmem:[#allocation11 + $0x1a0] sm:$0xff]
    %v541 = vld [vmem:[#allocation11 + $0x1a8] sm:$0xff]
    %v542 = vld [vmem:[#allocation11 + $0x1b0] sm:$0xff]
    %v543 = vld [vmem:[#allocation11 + $0x1b8] sm:$0xff]
    %v544 = vld [vmem:[#allocation11 + $0x1c0] sm:$0xff]
    %v545 = vld [vmem:[#allocation11 + $0x1c8] sm:$0xff]
    %v546 = vld [vmem:[#allocation11 + $0x1d0] sm:$0xff]
    %v547 = vld [vmem:[#allocation11 + $0x1d8] sm:$0xff]
    %v548 = vld [vmem:[#allocation11 + $0x1e0] sm:$0xff]
    %v549 = vld [vmem:[#allocation11 + $0x1e8] sm:$0xff]
    %v550 = vld [vmem:[#allocation11 + $0x1f0] sm:$0xff]
    %v551 = vld [vmem:[#allocation11 + $0x1f8] sm:$0xff]
    %v552 = vld [vmem:[%s7] sm:$0x1]
    %v554 = vlaneseq
    %v555 = vshrl.u32 %v554, 7
    %v556 = vsub.s32 0, %v555
    %v557 = vrot.slane %v552, %v556
    %559 = vmatprep.subr.mxu0 0.0
    %560 = vmatpush1.msra.mxu0 %v488
    %561 = vmatprep.subr.mxu0 0.0
    %562 = vmatpush1.msra.mxu0 %v489
    %563 = vmatprep.subr.mxu0 0.0
    %564 = vmatpush1.msra.mxu0 %v490
    %565 = vmatprep.subr.mxu0 0.0
    %566 = vmatpush1.msra.mxu0 %v491
    %567 = vmatprep.subr.mxu0 0.0
    %568 = vmatpush1.msra.mxu0 %v492
    %569 = vmatprep.subr.mxu0 0.0
    %570 = vmatpush1.msra.mxu0 %v493
    %571 = vmatprep.subr.mxu0 0.0
    %572 = vmatpush1.msra.mxu0 %v494
    %573 = vmatprep.subr.mxu0 0.0
    %574 = vmatpush1.msra.mxu0 %v495
    %575 = vmatprep.subr.mxu0 0.0
    %576 = vmatpush1.msra.mxu0 %v496
    %577 = vmatprep.subr.mxu0 0.0
    %578 = vmatpush1.msra.mxu0 %v497
    %579 = vmatprep.subr.mxu0 0.0
    %580 = vmatpush1.msra.mxu0 %v498
    %581 = vmatprep.subr.mxu0 0.0
    %582 = vmatpush1.msra.mxu0 %v499
    %583 = vmatprep.subr.mxu0 0.0
    %584 = vmatpush1.msra.mxu0 %v500
    %585 = vmatprep.subr.mxu0 0.0
    %586 = vmatpush1.msra.mxu0 %v501
    %587 = vmatprep.subr.mxu0 0.0
    %588 = vmatpush1.msra.mxu0 %v502
    %589 = vmatprep.subr.mxu0 0.0
    %590 = vmatpush1.msra.mxu0 %v503
    %591 = vmatprep.subr.mxu0 0.0
    %592 = vmatpush1.msra.mxu0 %v504
    %593 = vmatprep.subr.mxu0 0.0
    %594 = vmatpush1.msra.mxu0 %v505
    %595 = vmatprep.subr.mxu0 0.0
    %596 = vmatpush1.msra.mxu0 %v506
    %597 = vmatprep.subr.mxu0 0.0
    %598 = vmatpush1.msra.mxu0 %v507
    %599 = vmatprep.subr.mxu0 0.0
    %600 = vmatpush1.msra.mxu0 %v508
    %601 = vmatprep.subr.mxu0 0.0
    %602 = vmatpush1.msra.mxu0 %v509
    %603 = vmatprep.subr.mxu0 0.0
    %604 = vmatpush1.msra.mxu0 %v510
    %605 = vmatprep.subr.mxu0 0.0
    %606 = vmatpush1.msra.mxu0 %v511
    %607 = vmatprep.subr.mxu0 0.0
    %608 = vmatpush1.msra.mxu0 %v512
    %609 = vmatprep.subr.mxu0 0.0
    %610 = vmatpush1.msra.mxu0 %v513
    %611 = vmatprep.subr.mxu0 0.0
    %612 = vmatpush1.msra.mxu0 %v514
    %613 = vmatprep.subr.mxu0 0.0
    %614 = vmatpush1.msra.mxu0 %v515
    %615 = vmatprep.subr.mxu0 0.0
    %616 = vmatpush1.msra.mxu0 %v516
    %617 = vmatprep.subr.mxu0 0.0
    %618 = vmatpush1.msra.mxu0 %v517
    %619 = vmatprep.subr.mxu0 0.0
    %620 = vmatpush1.msra.mxu0 %v518
    %621 = vmatprep.subr.mxu0 0.0
    %622 = vmatpush1.msra.mxu0 %v519
    %623 = vmatprep.mubr.f32.mxu0 %v481
    %624 = vmatmul.mubr.f32.gmra.mrb[0].mxu0 %v480
    %v625 = vpop.f32.mrb[0].mxu0
    %v626 = vadd.f32 %v557, %v625
    %v627 = vpop.f32.mrb[0].mxu0
    %628 = vmatprep.mubr.f32.mxu0 %v485
    %629 = vmatmul.mubr.f32.gmra.mrb[0].mxu0 %v484
    %v630 = vpop.f32.mrb[0].mxu0
    %v631 = vadd.f32 %v557, %v630
    %v632 = vpop.f32.mrb[0].mxu0
    %633 = vdwg.mxu0
    %634 = vmatprep.subr.mxu0 0.0
    %635 = vmatpush1.msra.mxu0 %v520
    %636 = vmatprep.subr.mxu0 0.0
    %637 = vmatpush1.msra.mxu0 %v521
    %638 = vmatprep.subr.mxu0 0.0
    %639 = vmatpush1.msra.mxu0 %v522
    %640 = vmatprep.subr.mxu0 0.0
    %641 = vmatpush1.msra.mxu0 %v523
    %642 = vmatprep.subr.mxu0 0.0
    %643 = vmatpush1.msra.mxu0 %v524
    %644 = vmatprep.subr.mxu0 0.0
    %645 = vmatpush1.msra.mxu0 %v525
    %646 = vmatprep.subr.mxu0 0.0
    %647 = vmatpush1.msra.mxu0 %v526
    %648 = vmatprep.subr.mxu0 0.0
    %649 = vmatpush1.msra.mxu0 %v527
    %650 = vmatprep.subr.mxu0 0.0
    %651 = vmatpush1.msra.mxu0 %v528
    %652 = vmatprep.subr.mxu0 0.0
    %653 = vmatpush1.msra.mxu0 %v529
    %654 = vmatprep.subr.mxu0 0.0
    %655 = vmatpush1.msra.mxu0 %v530
    %656 = vmatprep.subr.mxu0 0.0
    %657 = vmatpush1.msra.mxu0 %v531
    %658 = vmatprep.subr.mxu0 0.0
    %659 = vmatpush1.msra.mxu0 %v532
    %660 = vmatprep.subr.mxu0 0.0
    %661 = vmatpush1.msra.mxu0 %v533
    %662 = vmatprep.subr.mxu0 0.0
    %663 = vmatpush1.msra.mxu0 %v534
    %664 = vmatprep.subr.mxu0 0.0
    %665 = vmatpush1.msra.mxu0 %v535
    %666 = vmatprep.subr.mxu0 0.0
    %667 = vmatpush1.msra.mxu0 %v536
    %668 = vmatprep.subr.mxu0 0.0
    %669 = vmatpush1.msra.mxu0 %v537
    %670 = vmatprep.subr.mxu0 0.0
    %671 = vmatpush1.msra.mxu0 %v538
    %672 = vmatprep.subr.mxu0 0.0
    %673 = vmatpush1.msra.mxu0 %v539
    %674 = vmatprep.subr.mxu0 0.0
    %675 = vmatpush1.msra.mxu0 %v540
    %676 = vmatprep.subr.mxu0 0.0
    %677 = vmatpush1.msra.mxu0 %v541
    %678 = vmatprep.subr.mxu0 0.0
    %679 = vmatpush1.msra.mxu0 %v542
    %680 = vmatprep.subr.mxu0 0.0
    %681 = vmatpush1.msra.mxu0 %v543
    %682 = vmatprep.subr.mxu0 0.0
    %683 = vmatpush1.msra.mxu0 %v544
    %684 = vmatprep.subr.mxu0 0.0
    %685 = vmatpush1.msra.mxu0 %v545
    %686 = vmatprep.subr.mxu0 0.0
    %687 = vmatpush1.msra.mxu0 %v546
    %688 = vmatprep.subr.mxu0 0.0
    %689 = vmatpush1.msra.mxu0 %v547
    %690 = vmatprep.subr.mxu0 0.0
    %691 = vmatpush1.msra.mxu0 %v548
    %692 = vmatprep.subr.mxu0 0.0
    %693 = vmatpush1.msra.mxu0 %v549
    %694 = vmatprep.subr.mxu0 0.0
    %695 = vmatpush1.msra.mxu0 %v550
    %696 = vmatprep.subr.mxu0 0.0
    %697 = vmatpush1.msra.mxu0 %v551
    %698 = vmatprep.mubr.f32.mxu0 %v483
    %699 = vmatmul.mubr.f32.gmra.mrb[0].mxu0 %v482
    %v700 = vpop.f32.mrb[0].mxu0
    %v701 = vadd.f32 %v626, %v700
    %v702 = vpop.f32.mrb[0].mxu0
    %703 = vmatprep.mubr.f32.mxu0 %v487
    %704 = vmatmul.mubr.f32.gmra.mrb[0].mxu0 %v486
    %v705 = vpop.f32.mrb[0].mxu0
    %v706 = vadd.f32 %v631, %v705
    %v707 = vpop.f32.mrb[0].mxu0
    %708 = vdwg.mxu0
    %709 = vst [vmem:[#allocation13] sm:$0xff] %v701
    %710 = vst [vmem:[#allocation13 + $0x8] sm:$0xff] %v706
    // Predicated region
    $region58: #{tpu_custom_call.1} parent=1 // pred_check
      _
    $region59: #{tpu_custom_call.1} parent=1 // pred_check_branch
      %712 = sbr.rel (0) target = $region61
    $region60: #{tpu_custom_call.1} parent=1 // pred_region
      %s714 = ssub.s32 256, 256
      %715 = vsyncadd [#allocation4], %s714
      %s716 = sshll.u32 [#allocation13], 4
      %s717 = int_to_ptr.vmem [resolvable:$true] %s716
      %722 = dma.vmem_to_hbm [thread:$0]  %s717, 256, %s8, [#allocation4], 128, 128, 8
    $region61: #{tpu_custom_call.1} parent=1 // pred_fallthru
      _
    // Predicated region
    $region62: #{tpu_custom_call.1} parent=1 // pred_check
      _
    $region63: #{tpu_custom_call.1} parent=1 // pred_check_branch
      %724 = sbr.rel (0) target = $region65
    $region64: #{tpu_custom_call.1} parent=1 // pred_region
      %725 = dma.done [#allocation4], 256
    $region65: #{tpu_custom_call.1} parent=1 // pred_fallthru
      _
    %726 = vsyncpa [#allocation3], 1
    %727 = vsyncpa [#allocation6], 1
    %728 = vsyncpa [#allocation9], 1
    %729 = vsyncpa [#allocation12], 1
    %730 = vsyncpa [#allocation4], 1

</llo_original>
